<compile_context>
chip_gen: v6e
topology: v6e:2x2x1
jax: 0.10.0
libtpu: 0.0.40
codegen_flags: <defaults>
</compile_context>

<pallas_src>
import jax
import jax.numpy as jnp
from jax.experimental import pallas as pl
from jax.experimental.pallas import tpu as pltpu

IN_FEATURES = 28 * 28   # 784
OUT_FEATURES = 10
N_PAD = 128             # lane-dense padded output width


def _round_up(a, m):
    return ((a + m - 1) // m) * m


def linear_kernel(x_ref, wt_ref, b_ref, o_ref):
    # x_ref : (TM, 784)   compute dtype (f32 or bf16)
    # wt_ref: (784, 128)  compute dtype (transposed + N-padded weight)
    # b_ref : (1, 128)    f32 (N-padded bias)
    # o_ref : (TM, 128)   out dtype (f32 or bf16)
    acc = jnp.dot(x_ref[...], wt_ref[...], preferred_element_type=jnp.float32)
    o_ref[...] = (acc + b_ref[...]).astype(o_ref.dtype)   # bias add in f32


def prepare_params(weight, bias, compute_dtype=jnp.float32):
    """One-time parameter prep (hoisted off the per-call path).

    weight: (10, 784), bias: (10,). Returns (wt_pad (784,128), b_pad (1,128)).
    """
    wt = jnp.zeros((IN_FEATURES, N_PAD), compute_dtype)
    wt = wt.at[:, :OUT_FEATURES].set(jnp.transpose(weight).astype(compute_dtype))
    b = jnp.zeros((1, N_PAD), jnp.float32)
    b = b.at[:, :OUT_FEATURES].set(bias.astype(jnp.float32))
    return wt, b


def my_model_forward(x_nchw, wt_pad, b_pad, *, tm=1024, out_dtype=jnp.float32):
    """x_nchw: (B, 1, 28, 28) -> (B, 10), computing x.view(B,-1) @ W^T + b."""
    B = x_nchw.shape[0]
    x2d = x_nchw.reshape(B, IN_FEATURES)
    if x2d.dtype != wt_pad.dtype:
        # Fallback only: ideally the producer already emits x in the compute
        # dtype — an un-fused wrapper cast re-reads + rewrites all of x in HBM.
        x2d = x2d.astype(wt_pad.dtype)

    # Batch tile: multiple of 8 (f32 sublane granule), capped at tm, and at
    # most ceil(B/2) so the batch grid has >= 2 "parallel" steps whenever
    # B > 8 (keeps both v7x TensorCores fed; harmless on single-TC v5e/v6e).
    tm_eff = min(tm, _round_up(max(pl.cdiv(B, 2), 1), 8))
    grid = (pl.cdiv(B, tm_eff),)   # ragged last block handled by Pallas

    x_bytes = jnp.dtype(x2d.dtype).itemsize
    w_bytes = jnp.dtype(wt_pad.dtype).itemsize
    o_bytes = jnp.dtype(out_dtype).itemsize
    cost = pl.CostEstimate(
        flops=2 * B * IN_FEATURES * N_PAD,
        transcendentals=0,
        bytes_accessed=(B * IN_FEATURES * x_bytes       # stream x
                        + IN_FEATURES * N_PAD * w_bytes  # weight (once)
                        + N_PAD * 4                      # bias (once)
                        + B * N_PAD * o_bytes),          # output writeback
    )

    out_padded = pl.pallas_call(
        linear_kernel,
        out_shape=jax.ShapeDtypeStruct((B, N_PAD), out_dtype),
        grid=grid,
        in_specs=[
            # x streamed per batch tile (double-buffered by the pipeline).
            pl.BlockSpec((tm_eff, IN_FEATURES), lambda i: (i, 0)),
            # weight + bias: constant index map -> fetched once, VMEM-resident
            # across all grid steps.
            pl.BlockSpec((IN_FEATURES, N_PAD), lambda i: (0, 0)),
            pl.BlockSpec((1, N_PAD), lambda i: (0, 0)),
        ],
        out_specs=pl.BlockSpec((tm_eff, N_PAD), lambda i: (i, 0)),
        compiler_params=pltpu.CompilerParams(
            dimension_semantics=("parallel",),   # megacore sharding on v7x
        ),
        cost_estimate=cost,
    )(x2d, wt_pad, b_pad)

    # Column slice back to the module's (B, 10) contract.  If the downstream
    # consumer (loss / argmax) can take the padded 128-wide slab, skip this.
    return out_padded[:, :OUT_FEATURES]


if __name__ == "__main__":
    key = jax.random.PRNGKey(0)
    kx, kw, kb, kx2 = jax.random.split(key, 4)

    # nn.Linear default init: U(-1/sqrt(fan_in), 1/sqrt(fan_in)).
    bound = 1.0 / (IN_FEATURES ** 0.5)
    weight = jax.random.uniform(kw, (OUT_FEATURES, IN_FEATURES),
                                minval=-bound, maxval=bound, dtype=jnp.float32)
    bias = jax.random.uniform(kb, (OUT_FEATURES,),
                              minval=-bound, maxval=bound, dtype=jnp.float32)

    # One-time parameter preparation (transpose + pad N to 128).
    wt_pad, b_pad = prepare_params(weight, bias, compute_dtype=jnp.float32)

    # Case 1: tiny batch, f32 output (exact module semantics, tight check).
    B = 2
    x = jax.random.normal(kx, (B, 1, 28, 28), dtype=jnp.float32)
    fwd = jax.jit(lambda xx: my_model_forward(xx, wt_pad, b_pad))
    out = jax.block_until_ready(fwd(x))
    ref = x.reshape(B, -1) @ weight.T + bias
    assert out.shape == (B, OUT_FEATURES)
    assert jnp.allclose(out, ref, atol=1e-4, rtol=1e-4)

    # Case 2: non-multiple-of-8 batch (exercises the ragged last grid block,
    # no wrapper pad) with bf16 output (halved writeback traffic).
    B2 = 100
    x2 = jax.random.normal(kx2, (B2, 1, 28, 28), dtype=jnp.float32)
    fwd_bf16 = jax.jit(
        lambda xx: my_model_forward(xx, wt_pad, b_pad, out_dtype=jnp.bfloat16))
    out2 = jax.block_until_ready(fwd_bf16(x2))
    ref2 = x2.reshape(B2, -1) @ weight.T + bias
    assert out2.shape == (B2, OUT_FEATURES)
    assert jnp.allclose(out2.astype(jnp.float32), ref2, atol=3e-2, rtol=3e-2)

    print("KERNEL_OK")
</pallas_src>

<mosaic_0001>
module attributes {stable_mosaic.version = 11 : i64} {
  func.func @linear_kernel(%arg0: i32, %arg1: memref<8x784xf32, #tpu.memory_space<vmem>>, %arg2: memref<784x128xf32, #tpu.memory_space<vmem>>, %arg3: memref<1x128xf32, #tpu.memory_space<vmem>>, %arg4: memref<8x128xf32, #tpu.memory_space<vmem>>) attributes {dimension_semantics = [#tpu.dimension_semantics<parallel>], iteration_bounds = array<i64: 1>, scalar_prefetch = 0 : i64, scratch_operands = 0 : i64, tpu.core_type = #tpu.core_type<tc>, window_params = [{transform_indices = @transform_0, window_bounds = array<i64: 8, 784>}, {pipeline_mode = #tpu.pipeline_mode<synchronous>, transform_indices = @transform_1, window_bounds = array<i64: 784, 128>}, {pipeline_mode = #tpu.pipeline_mode<synchronous>, transform_indices = @transform_2, window_bounds = array<i64: 1, 128>}, {transform_indices = @transform_3, window_bounds = array<i64: 8, 128>}]} {
    %c0 = arith.constant 0 : index
    %c0_0 = arith.constant 0 : index
    %0 = vector.load %arg1[%c0, %c0_0] : memref<8x784xf32, #tpu.memory_space<vmem>>, vector<8x784xf32>
    %c0_1 = arith.constant 0 : index
    %c0_2 = arith.constant 0 : index
    %1 = vector.load %arg2[%c0_1, %c0_2] : memref<784x128xf32, #tpu.memory_space<vmem>>, vector<784x128xf32>
    %cst = arith.constant dense<0.000000e+00> : vector<8x128xf32>
    %2 = tpu.matmul %0, %1, %cst {dimension_numbers = #tpu.dot_dimension_numbers<[1], [0], [0], [1], [0, 0, 1, 1], [], []>} : vector<8x784xf32>, vector<784x128xf32>, vector<8x128xf32> -> vector<8x128xf32>
    %c0_3 = arith.constant 0 : index
    %c0_4 = arith.constant 0 : index
    %3 = vector.load %arg3[%c0_3, %c0_4] : memref<1x128xf32, #tpu.memory_space<vmem>>, vector<1x128xf32>
    %4 = vector.broadcast %3 : vector<1x128xf32> to vector<8x128xf32>
    %5 = arith.addf %2, %4 : vector<8x128xf32>
    %c0_5 = arith.constant 0 : index
    %c0_6 = arith.constant 0 : index
    %6 = vector.load %arg4[%c0_5, %c0_6] : memref<8x128xf32, #tpu.memory_space<vmem>>, vector<8x128xf32>
    tpu.vector_store %arg4[%c0_5, %c0_6], %5 {strides = array<i32>} : memref<8x128xf32, #tpu.memory_space<vmem>>, vector<8x128xf32>,
    return
  }
  func.func @transform_0(%arg0: i32) -> (i32, i32) {
    %c0_i32 = arith.constant 0 : i32
    %c0_i32_0 = arith.constant 0 : i32
    return %arg0, %c0_i32 : i32, i32
  }
  func.func @transform_1(%arg0: i32) -> (i32, i32) {
    %c0_i32 = arith.constant 0 : i32
    %c0_i32_0 = arith.constant 0 : i32
    %c0_i32_1 = arith.constant 0 : i32
    return %c0_i32, %c0_i32_0 : i32, i32
  }
  func.func @transform_2(%arg0: i32) -> (i32, i32) {
    %c0_i32 = arith.constant 0 : i32
    %c0_i32_0 = arith.constant 0 : i32
    %c0_i32_1 = arith.constant 0 : i32
    return %c0_i32, %c0_i32_0 : i32, i32
  }
  func.func @transform_3(%arg0: i32) -> (i32, i32) {
    %c0_i32 = arith.constant 0 : i32
    %c0_i32_0 = arith.constant 0 : i32
    return %arg0, %c0_i32 : i32, i32
  }
}

</mosaic_0001>

<llo_original>
// kernel: _lambda_.1
$region0: #{_lambda_.1}
  #allocation0 [shape = 'u32[]', space=smem, size = 0x4, offset = 0x4, fixed_abs, tag = 'smem constant byte address 0x4 - core index']
  #allocation1 [shape = 'u32[144,128]{1,0:T(1,128)}', space=vmem, size = 0x12000, scoped, tag = 'internal scratch']
  %s0 = inlined_call_operand.vmem [shape: f32[2,784], index: 0, kind: input, shape index: {}]
  %s1 = inlined_call_operand.hbm [shape: f32[784,128], index: 1, kind: input, shape index: {}]
  %s2 = inlined_call_operand.vmem [shape: f32[1,128], index: 2, kind: input, shape index: {}]
  %s3 = inlined_call_operand.hbm [shape: f32[2,128], index: 3, kind: output, shape index: {}]
  %s4 = sld [smem:[#allocation0]]
  $region26: #{_lambda_.1} parent=0
    _
  %s6 = ssub.s32 1, %s4
  %s7 = scalar_select 0, %s6, %s4
  $region1: #{_lambda_.1} parent=0
    #allocation2 [shape = 'u8[401408]{0}', space=vmem, size = 0x62000, scoped, tag = 'input window, operand 1, single buffered']
    #allocation3 [shape = 's32[1]{0}', space=sflag, size = 0x4, scoped, tag = 'scoped memory for _lambda_.1']
    #allocation4 [shape = 's32[1]{0}', space=sflag, size = 0x4, scoped, tag = 'scoped memory for _lambda_.1']
    #allocation5 [shape = 'u8[4096]{0}', space=vmem, size = 0x1000, scoped, tag = 'output window, operand 0, single buffered']
    %8 = vsyncpa [#allocation3], 0
    %9 = vsyncpa [#allocation4], 0
    // Predicated region
    $region2: #{_lambda_.1} parent=1 // pred_check
      _
    $region3: #{_lambda_.1} parent=1 // pred_check_branch
      %11 = sbr.rel (0) target = $region5
    $region4: #{_lambda_.1} parent=1 // pred_region
      _
    $region5: #{_lambda_.1} parent=1 // pred_fallthru
      _
    // Predicated region
    $region6: #{_lambda_.1} parent=1 // pred_check
      _
    $region7: #{_lambda_.1} parent=1 // pred_check_branch
      %13 = sbr.rel (0) target = $region9
    $region8: #{_lambda_.1} parent=1 // pred_region
      %s15 = ssub.s32 12544, 12544
      %16 = vsyncadd [#allocation3], %s15
      %s17 = sshll.u32 [#allocation2], 4
      %s18 = int_to_ptr.vmem [resolvable:$true] %s17
      %23 = dma.hbm_to_vmem [thread:$0]  %s1, 12544, %s18, [#allocation3], 128, 128, 8
    $region9: #{_lambda_.1} parent=1 // pred_fallthru
      _
    // Predicated region
    $region10: #{_lambda_.1} parent=1 // pred_check
      _
    $region11: #{_lambda_.1} parent=1 // pred_check_branch
      %25 = sbr.rel (0) target = $region13
    $region12: #{_lambda_.1} parent=1 // pred_region
      _
    $region13: #{_lambda_.1} parent=1 // pred_fallthru
      _
    // Predicated region
    $region14: #{_lambda_.1} parent=1 // pred_check
      _
    $region15: #{_lambda_.1} parent=1 // pred_check_branch
      %27 = sbr.rel (0) target = $region17
    $region16: #{_lambda_.1} parent=1 // pred_region
      %28 = dma.done [#allocation3], 12544
    $region17: #{_lambda_.1} parent=1 // pred_fallthru
      _
    %v29 = vld [vmem:[%s0] sm:$0xff]
    %v30 = vld [vmem:[%s0 + $0x8] sm:$0x3f]
    %v31 = vld [vmem:[%s0 + $0xe] sm:$0xff]
    %v32 = vld [vmem:[%s0 + $0x16] sm:$0x3f]
    %v33 = vld [vmem:[%s0 + $0x1c] sm:$0xff]
    %v34 = vld [vmem:[%s0 + $0x24] sm:$0x3f]
    %v35 = vld [vmem:[%s0 + $0x2a] sm:$0xff]
    %v36 = vld [vmem:[%s0 + $0x32] sm:$0x3f]
    %v37 = vld [vmem:[#allocation2] sm:$0xff]
    %v38 = vld [vmem:[#allocation2 + $0x8] sm:$0xff]
    %v39 = vld [vmem:[#allocation2 + $0x10] sm:$0xff]
    %v40 = vld [vmem:[#allocation2 + $0x18] sm:$0xff]
    %v41 = vld [vmem:[#allocation2 + $0x20] sm:$0xff]
    %v42 = vld [vmem:[#allocation2 + $0x28] sm:$0xff]
    %v43 = vld [vmem:[#allocation2 + $0x30] sm:$0xff]
    %v44 = vld [vmem:[#allocation2 + $0x38] sm:$0xff]
    %v45 = vld [vmem:[#allocation2 + $0x40] sm:$0xff]
    %v46 = vld [vmem:[#allocation2 + $0x48] sm:$0xff]
    %v47 = vld [vmem:[#allocation2 + $0x50] sm:$0xff]
    %v48 = vld [vmem:[#allocation2 + $0x58] sm:$0xff]
    %v49 = vld [vmem:[#allocation2 + $0x60] sm:$0xff]
    %v50 = vld [vmem:[#allocation2 + $0x68] sm:$0xff]
    %v51 = vld [vmem:[#allocation2 + $0x70] sm:$0xff]
    %v52 = vld [vmem:[#allocation2 + $0x78] sm:$0xff]
    %v53 = vld [vmem:[#allocation2 + $0x80] sm:$0xff]
    %v54 = vld [vmem:[#allocation2 + $0x88] sm:$0xff]
    %v55 = vld [vmem:[#allocation2 + $0x90] sm:$0xff]
    %v56 = vld [vmem:[#allocation2 + $0x98] sm:$0xff]
    %v57 = vld [vmem:[#allocation2 + $0xa0] sm:$0xff]
    %v58 = vld [vmem:[#allocation2 + $0xa8] sm:$0xff]
    %v59 = vld [vmem:[#allocation2 + $0xb0] sm:$0xff]
    %v60 = vld [vmem:[#allocation2 + $0xb8] sm:$0xff]
    %v61 = vld [vmem:[#allocation2 + $0xc0] sm:$0xff]
    %v62 = vld [vmem:[#allocation2 + $0xc8] sm:$0xff]
    %v63 = vld [vmem:[#allocation2 + $0xd0] sm:$0xff]
    %v64 = vld [vmem:[#allocation2 + $0xd8] sm:$0xff]
    %v65 = vld [vmem:[#allocation2 + $0xe0] sm:$0xff]
    %v66 = vld [vmem:[#allocation2 + $0xe8] sm:$0xff]
    %v67 = vld [vmem:[#allocation2 + $0xf0] sm:$0xff]
    %v68 = vld [vmem:[#allocation2 + $0xf8] sm:$0xff]
    %v69 = vld [vmem:[#allocation2 + $0x100] sm:$0xff]
    %v70 = vld [vmem:[#allocation2 + $0x108] sm:$0xff]
    %v71 = vld [vmem:[#allocation2 + $0x110] sm:$0xff]
    %v72 = vld [vmem:[#allocation2 + $0x118] sm:$0xff]
    %v73 = vld [vmem:[#allocation2 + $0x120] sm:$0xff]
    %v74 = vld [vmem:[#allocation2 + $0x128] sm:$0xff]
    %v75 = vld [vmem:[#allocation2 + $0x130] sm:$0xff]
    %v76 = vld [vmem:[#allocation2 + $0x138] sm:$0xff]
    %v77 = vld [vmem:[#allocation2 + $0x140] sm:$0xff]
    %v78 = vld [vmem:[#allocation2 + $0x148] sm:$0xff]
    %v79 = vld [vmem:[#allocation2 + $0x150] sm:$0xff]
    %v80 = vld [vmem:[#allocation2 + $0x158] sm:$0xff]
    %v81 = vld [vmem:[#allocation2 + $0x160] sm:$0xff]
    %v82 = vld [vmem:[#allocation2 + $0x168] sm:$0xff]
    %v83 = vld [vmem:[#allocation2 + $0x170] sm:$0xff]
    %v84 = vld [vmem:[#allocation2 + $0x178] sm:$0xff]
    %v85 = vld [vmem:[#allocation2 + $0x180] sm:$0xff]
    %v86 = vld [vmem:[#allocation2 + $0x188] sm:$0xff]
    %v87 = vld [vmem:[#allocation2 + $0x190] sm:$0xff]
    %v88 = vld [vmem:[#allocation2 + $0x198] sm:$0xff]
    %v89 = vld [vmem:[#allocation2 + $0x1a0] sm:$0xff]
    %v90 = vld [vmem:[#allocation2 + $0x1a8] sm:$0xff]
    %v91 = vld [vmem:[#allocation2 + $0x1b0] sm:$0xff]
    %v92 = vld [vmem:[#allocation2 + $0x1b8] sm:$0xff]
    %v93 = vld [vmem:[#allocation2 + $0x1c0] sm:$0xff]
    %v94 = vld [vmem:[#allocation2 + $0x1c8] sm:$0xff]
    %v95 = vld [vmem:[#allocation2 + $0x1d0] sm:$0xff]
    %v96 = vld [vmem:[#allocation2 + $0x1d8] sm:$0xff]
    %v97 = vld [vmem:[#allocation2 + $0x1e0] sm:$0xff]
    %v98 = vld [vmem:[#allocation2 + $0x1e8] sm:$0xff]
    %v99 = vld [vmem:[#allocation2 + $0x1f0] sm:$0xff]
    %v100 = vld [vmem:[#allocation2 + $0x1f8] sm:$0xff]
    %v101 = vld [vmem:[#allocation2 + $0x200] sm:$0xff]
    %v102 = vld [vmem:[#allocation2 + $0x208] sm:$0xff]
    %v103 = vld [vmem:[#allocation2 + $0x210] sm:$0xff]
    %v104 = vld [vmem:[#allocation2 + $0x218] sm:$0xff]
    %v105 = vld [vmem:[#allocation2 + $0x220] sm:$0xff]
    %v106 = vld [vmem:[#allocation2 + $0x228] sm:$0xff]
    %v107 = vld [vmem:[#allocation2 + $0x230] sm:$0xff]
    %v108 = vld [vmem:[#allocation2 + $0x238] sm:$0xff]
    %v109 = vld [vmem:[#allocation2 + $0x240] sm:$0xff]
    %v110 = vld [vmem:[#allocation2 + $0x248] sm:$0xff]
    %v111 = vld [vmem:[#allocation2 + $0x250] sm:$0xff]
    %v112 = vld [vmem:[#allocation2 + $0x258] sm:$0xff]
    %v113 = vld [vmem:[#allocation2 + $0x260] sm:$0xff]
    %v114 = vld [vmem:[#allocation2 + $0x268] sm:$0xff]
    %v115 = vld [vmem:[#allocation2 + $0x270] sm:$0xff]
    %v116 = vld [vmem:[#allocation2 + $0x278] sm:$0xff]
    %v117 = vld [vmem:[#allocation2 + $0x280] sm:$0xff]
    %v118 = vld [vmem:[#allocation2 + $0x288] sm:$0xff]
    %v119 = vld [vmem:[#allocation2 + $0x290] sm:$0xff]
    %v120 = vld [vmem:[#allocation2 + $0x298] sm:$0xff]
    %v121 = vld [vmem:[#allocation2 + $0x2a0] sm:$0xff]
    %v122 = vld [vmem:[#allocation2 + $0x2a8] sm:$0xff]
    %v123 = vld [vmem:[#allocation2 + $0x2b0] sm:$0xff]
    %v124 = vld [vmem:[#allocation2 + $0x2b8] sm:$0xff]
    %v125 = vld [vmem:[#allocation2 + $0x2c0] sm:$0xff]
    %v126 = vld [vmem:[#allocation2 + $0x2c8] sm:$0xff]
    %v127 = vld [vmem:[#allocation2 + $0x2d0] sm:$0xff]
    %v128 = vld [vmem:[#allocation2 + $0x2d8] sm:$0xff]
    %v129 = vld [vmem:[#allocation2 + $0x2e0] sm:$0xff]
    %v130 = vld [vmem:[#allocation2 + $0x2e8] sm:$0xff]
    %v131 = vld [vmem:[#allocation2 + $0x2f0] sm:$0xff]
    %v132 = vld [vmem:[#allocation2 + $0x2f8] sm:$0xff]
    %v133 = vld [vmem:[#allocation2 + $0x300] sm:$0xff]
    %v134 = vld [vmem:[#allocation2 + $0x308] sm:$0xff]
    %v135 = vld [vmem:[%s2] sm:$0x1]
    %v137 = vlaneseq
    %v138 = vshrl.u32 %v137, 7
    %v139 = vsub.s32 0, %v138
    %v140 = vrot.slane %v135, %v139
    %v150 = vcombine.low %v29, %v31
    %v151 = vcombine.high %v29, %v31
    %v152 = vcombine.low %v33, %v35
    %v153 = vcombine.high %v33, %v35
    %v155 = vunpack.c.l.s4 1983009808
    %v156 = vunpack.c.0.s8 %v155
    %v157 = vlaneseq
    %v158 = vshrl.u32 %v157, 7
    %v159 = vsub.s32 %v156, %v158
    %v160 = vrot.slane %v150, %v159
    %v162 = vunpack.c.l.s4 1983009808
    %v163 = vunpack.c.0.s8 %v162
    %v164 = vlaneseq
    %v165 = vshrl.u32 %v164, 7
    %v166 = vsub.s32 %v163, %v165
    %v167 = vrot.slane %v151, %v166
    %v169 = vunpack.c.l.s4 1983009808
    %v170 = vunpack.c.0.s8 %v169
    %v171 = vlaneseq
    %v172 = vshrl.u32 %v171, 7
    %v173 = vsub.s32 %v170, %v172
    %v174 = vrot.slane %v152, %v173
    %v176 = vunpack.c.l.s4 1983009808
    %v177 = vunpack.c.0.s8 %v176
    %v178 = vlaneseq
    %v179 = vshrl.u32 %v178, 7
    %v180 = vsub.s32 %v177, %v179
    %v181 = vrot.slane %v153, %v180
    %v182 = vcombine.low %v160, %v174
    %v183 = vcombine.high %v160, %v174
    %v184 = vcombine.low %v167, %v181
    %v185 = vcombine.high %v167, %v181
    %v186 = vcombine.low %v30, %v32
    %v187 = vcombine.high %v30, %v32
    %v188 = vcombine.low %v34, %v36
    %v189 = vcombine.high %v34, %v36
    %v191 = vunpack.c.l.s4 1983009808
    %v192 = vunpack.c.0.s8 %v191
    %v193 = vlaneseq
    %v194 = vshrl.u32 %v193, 7
    %v195 = vsub.s32 %v192, %v194
    %v196 = vrot.slane %v186, %v195
    %v198 = vunpack.c.l.s4 1983009808
    %v199 = vunpack.c.0.s8 %v198
    %v200 = vlaneseq
    %v201 = vshrl.u32 %v200, 7
    %v202 = vsub.s32 %v199, %v201
    %v203 = vrot.slane %v187, %v202
    %v205 = vunpack.c.l.s4 1983009808
    %v206 = vunpack.c.0.s8 %v205
    %v207 = vlaneseq
    %v208 = vshrl.u32 %v207, 7
    %v209 = vsub.s32 %v206, %v208
    %v210 = vrot.slane %v188, %v209
    %v212 = vunpack.c.l.s4 1983009808
    %v213 = vunpack.c.0.s8 %v212
    %v214 = vlaneseq
    %v215 = vshrl.u32 %v214, 7
    %v216 = vsub.s32 %v213, %v215
    %v217 = vrot.slane %v189, %v216
    %v218 = vcombine.low %v196, %v210
    %v219 = vcombine.high %v196, %v210
    %v220 = vcombine.low %v203, %v217
    %vm227 = vcmask 130048
    %v228 = vsel %vm227, %v220, 0
    %230 = vmatprep.subr.mxu0 0.0
    %231 = vmatpush1.msra.mxu0 %v52
    %232 = vmatprep.subr.mxu0 0.0
    %233 = vmatpush1.msra.mxu0 %v51
    %234 = vmatprep.subr.mxu0 0.0
    %235 = vmatpush1.msra.mxu0 %v50
    %236 = vmatprep.subr.mxu0 0.0
    %237 = vmatpush1.msra.mxu0 %v49
    %238 = vmatprep.subr.mxu0 0.0
    %239 = vmatpush1.msra.mxu0 %v48
    %240 = vmatprep.subr.mxu0 0.0
    %241 = vmatpush1.msra.mxu0 %v47
    %242 = vmatprep.subr.mxu0 0.0
    %243 = vmatpush1.msra.mxu0 %v46
    %244 = vmatprep.subr.mxu0 0.0
    %245 = vmatpush1.msra.mxu0 %v45
    %246 = vmatprep.subr.mxu0 0.0
    %247 = vmatpush1.msra.mxu0 %v44
    %248 = vmatprep.subr.mxu0 0.0
    %249 = vmatpush1.msra.mxu0 %v43
    %250 = vmatprep.subr.mxu0 0.0
    %251 = vmatpush1.msra.mxu0 %v42
    %252 = vmatprep.subr.mxu0 0.0
    %253 = vmatpush1.msra.mxu0 %v41
    %254 = vmatprep.subr.mxu0 0.0
    %255 = vmatpush1.msra.mxu0 %v40
    %256 = vmatprep.subr.mxu0 0.0
    %257 = vmatpush1.msra.mxu0 %v39
    %258 = vmatprep.subr.mxu0 0.0
    %259 = vmatpush1.msra.mxu0 %v38
    %260 = vmatprep.subr.mxu0 0.0
    %261 = vmatpush1.msra.mxu0 %v37
    %262 = vmatprep.subr.mxu0 0.0
    %263 = vmatpush2.msra.mxu0 %v68
    %264 = vmatprep.subr.mxu0 0.0
    %265 = vmatpush2.msra.mxu0 %v67
    %266 = vmatprep.subr.mxu0 0.0
    %267 = vmatpush2.msra.mxu0 %v66
    %268 = vmatprep.subr.mxu0 0.0
    %269 = vmatpush2.msra.mxu0 %v65
    %270 = vmatprep.subr.mxu0 0.0
    %271 = vmatpush2.msra.mxu0 %v64
    %272 = vmatprep.subr.mxu0 0.0
    %273 = vmatpush2.msra.mxu0 %v63
    %274 = vmatprep.subr.mxu0 0.0
    %275 = vmatpush2.msra.mxu0 %v62
    %276 = vmatprep.subr.mxu0 0.0
    %277 = vmatpush2.msra.mxu0 %v61
    %278 = vmatprep.subr.mxu0 0.0
    %279 = vmatpush2.msra.mxu0 %v60
    %280 = vmatprep.subr.mxu0 0.0
    %281 = vmatpush2.msra.mxu0 %v59
    %282 = vmatprep.subr.mxu0 0.0
    %283 = vmatpush2.msra.mxu0 %v58
    %284 = vmatprep.subr.mxu0 0.0
    %285 = vmatpush2.msra.mxu0 %v57
    %286 = vmatprep.subr.mxu0 0.0
    %287 = vmatpush2.msra.mxu0 %v56
    %288 = vmatprep.subr.mxu0 0.0
    %289 = vmatpush2.msra.mxu0 %v55
    %290 = vmatprep.subr.mxu0 0.0
    %291 = vmatpush2.msra.mxu0 %v54
    %292 = vmatprep.subr.mxu0 0.0
    %293 = vmatpush2.msra.mxu0 %v53
    %294 = vmatprep.mubr.f32.mxu0 %v183
    %295 = vmatmul.mubr.f32.gmra.mxu0 %v182
    %v296 = vpop.f32.mrf.mxu0
    %v297 = vadd.f32 %v140, %v296
    %v298 = vpop.f32.mrf.mxu0
    %299 = vdwg.mxu0
    %300 = vmatprep.subr.mxu0 0.0
    %301 = vmatpush1.msra.mxu0 %v84
    %302 = vmatprep.subr.mxu0 0.0
    %303 = vmatpush1.msra.mxu0 %v83
    %304 = vmatprep.subr.mxu0 0.0
    %305 = vmatpush1.msra.mxu0 %v82
    %306 = vmatprep.subr.mxu0 0.0
    %307 = vmatpush1.msra.mxu0 %v81
    %308 = vmatprep.subr.mxu0 0.0
    %309 = vmatpush1.msra.mxu0 %v80
    %310 = vmatprep.subr.mxu0 0.0
    %311 = vmatpush1.msra.mxu0 %v79
    %312 = vmatprep.subr.mxu0 0.0
    %313 = vmatpush1.msra.mxu0 %v78
    %314 = vmatprep.subr.mxu0 0.0
    %315 = vmatpush1.msra.mxu0 %v77
    %316 = vmatprep.subr.mxu0 0.0
    %317 = vmatpush1.msra.mxu0 %v76
    %318 = vmatprep.subr.mxu0 0.0
    %319 = vmatpush1.msra.mxu0 %v75
    %320 = vmatprep.subr.mxu0 0.0
    %321 = vmatpush1.msra.mxu0 %v74
    %322 = vmatprep.subr.mxu0 0.0
    %323 = vmatpush1.msra.mxu0 %v73
    %324 = vmatprep.subr.mxu0 0.0
    %325 = vmatpush1.msra.mxu0 %v72
    %326 = vmatprep.subr.mxu0 0.0
    %327 = vmatpush1.msra.mxu0 %v71
    %328 = vmatprep.subr.mxu0 0.0
    %329 = vmatpush1.msra.mxu0 %v70
    %330 = vmatprep.subr.mxu0 0.0
    %331 = vmatpush1.msra.mxu0 %v69
    %332 = vmatprep.subr.mxu0 0.0
    %333 = vmatpush2.msra.mxu0 %v100
    %334 = vmatprep.subr.mxu0 0.0
    %335 = vmatpush2.msra.mxu0 %v99
    %336 = vmatprep.subr.mxu0 0.0
    %337 = vmatpush2.msra.mxu0 %v98
    %338 = vmatprep.subr.mxu0 0.0
    %339 = vmatpush2.msra.mxu0 %v97
    %340 = vmatprep.subr.mxu0 0.0
    %341 = vmatpush2.msra.mxu0 %v96
    %342 = vmatprep.subr.mxu0 0.0
    %343 = vmatpush2.msra.mxu0 %v95
    %344 = vmatprep.subr.mxu0 0.0
    %345 = vmatpush2.msra.mxu0 %v94
    %346 = vmatprep.subr.mxu0 0.0
    %347 = vmatpush2.msra.mxu0 %v93
    %348 = vmatprep.subr.mxu0 0.0
    %349 = vmatpush2.msra.mxu0 %v92
    %350 = vmatprep.subr.mxu0 0.0
    %351 = vmatpush2.msra.mxu0 %v91
    %352 = vmatprep.subr.mxu0 0.0
    %353 = vmatpush2.msra.mxu0 %v90
    %354 = vmatprep.subr.mxu0 0.0
    %355 = vmatpush2.msra.mxu0 %v89
    %356 = vmatprep.subr.mxu0 0.0
    %357 = vmatpush2.msra.mxu0 %v88
    %358 = vmatprep.subr.mxu0 0.0
    %359 = vmatpush2.msra.mxu0 %v87
    %360 = vmatprep.subr.mxu0 0.0
    %361 = vmatpush2.msra.mxu0 %v86
    %362 = vmatprep.subr.mxu0 0.0
    %363 = vmatpush2.msra.mxu0 %v85
    %364 = vmatprep.mubr.f32.mxu0 %v185
    %365 = vmatmul.mubr.f32.gmra.mxu0 %v184
    %v366 = vpop.f32.mrf.mxu0
    %v367 = vadd.f32 %v297, %v366
    %v368 = vpop.f32.mrf.mxu0
    %369 = vdwg.mxu0
    %370 = vmatprep.subr.mxu0 0.0
    %371 = vmatpush1.msra.mxu0 %v116
    %372 = vmatprep.subr.mxu0 0.0
    %373 = vmatpush1.msra.mxu0 %v115
    %374 = vmatprep.subr.mxu0 0.0
    %375 = vmatpush1.msra.mxu0 %v114
    %376 = vmatprep.subr.mxu0 0.0
    %377 = vmatpush1.msra.mxu0 %v113
    %378 = vmatprep.subr.mxu0 0.0
    %379 = vmatpush1.msra.mxu0 %v112
    %380 = vmatprep.subr.mxu0 0.0
    %381 = vmatpush1.msra.mxu0 %v111
    %382 = vmatprep.subr.mxu0 0.0
    %383 = vmatpush1.msra.mxu0 %v110
    %384 = vmatprep.subr.mxu0 0.0
    %385 = vmatpush1.msra.mxu0 %v109
    %386 = vmatprep.subr.mxu0 0.0
    %387 = vmatpush1.msra.mxu0 %v108
    %388 = vmatprep.subr.mxu0 0.0
    %389 = vmatpush1.msra.mxu0 %v107
    %390 = vmatprep.subr.mxu0 0.0
    %391 = vmatpush1.msra.mxu0 %v106
    %392 = vmatprep.subr.mxu0 0.0
    %393 = vmatpush1.msra.mxu0 %v105
    %394 = vmatprep.subr.mxu0 0.0
    %395 = vmatpush1.msra.mxu0 %v104
    %396 = vmatprep.subr.mxu0 0.0
    %397 = vmatpush1.msra.mxu0 %v103
    %398 = vmatprep.subr.mxu0 0.0
    %399 = vmatpush1.msra.mxu0 %v102
    %400 = vmatprep.subr.mxu0 0.0
    %401 = vmatpush1.msra.mxu0 %v101
    %402 = vmatprep.subr.mxu0 0.0
    %403 = vmatpush2.msra.mxu0 %v132
    %404 = vmatprep.subr.mxu0 0.0
    %405 = vmatpush2.msra.mxu0 %v131
    %406 = vmatprep.subr.mxu0 0.0
    %407 = vmatpush2.msra.mxu0 %v130
    %408 = vmatprep.subr.mxu0 0.0
    %409 = vmatpush2.msra.mxu0 %v129
    %410 = vmatprep.subr.mxu0 0.0
    %411 = vmatpush2.msra.mxu0 %v128
    %412 = vmatprep.subr.mxu0 0.0
    %413 = vmatpush2.msra.mxu0 %v127
    %414 = vmatprep.subr.mxu0 0.0
    %415 = vmatpush2.msra.mxu0 %v126
    %416 = vmatprep.subr.mxu0 0.0
    %417 = vmatpush2.msra.mxu0 %v125
    %418 = vmatprep.subr.mxu0 0.0
    %419 = vmatpush2.msra.mxu0 %v124
    %420 = vmatprep.subr.mxu0 0.0
    %421 = vmatpush2.msra.mxu0 %v123
    %422 = vmatprep.subr.mxu0 0.0
    %423 = vmatpush2.msra.mxu0 %v122
    %424 = vmatprep.subr.mxu0 0.0
    %425 = vmatpush2.msra.mxu0 %v121
    %426 = vmatprep.subr.mxu0 0.0
    %427 = vmatpush2.msra.mxu0 %v120
    %428 = vmatprep.subr.mxu0 0.0
    %429 = vmatpush2.msra.mxu0 %v119
    %430 = vmatprep.subr.mxu0 0.0
    %431 = vmatpush2.msra.mxu0 %v118
    %432 = vmatprep.subr.mxu0 0.0
    %433 = vmatpush2.msra.mxu0 %v117
    %434 = vmatprep.mubr.f32.mxu0 %v219
    %435 = vmatmul.mubr.f32.gmra.mxu0 %v218
    %v436 = vpop.f32.mrf.mxu0
    %v437 = vadd.f32 %v367, %v436
    %v438 = vpop.f32.mrf.mxu0
    %439 = vdwg.mxu0
    %440 = vmatprep.subr.mxu0 0.0
    %441 = vmatpush1.msra.mxu0 0.0
    %442 = vmatprep.subr.mxu0 0.0
    %443 = vmatpush1.msra.mxu0 0.0
    %444 = vmatprep.subr.mxu0 0.0
    %445 = vmatpush1.msra.mxu0 0.0
    %446 = vmatprep.subr.mxu0 0.0
    %447 = vmatpush1.msra.mxu0 0.0
    %448 = vmatprep.subr.mxu0 0.0
    %449 = vmatpush1.msra.mxu0 0.0
    %450 = vmatprep.subr.mxu0 0.0
    %451 = vmatpush1.msra.mxu0 0.0
    %452 = vmatprep.subr.mxu0 0.0
    %453 = vmatpush1.msra.mxu0 0.0
    %454 = vmatprep.subr.mxu0 0.0
    %455 = vmatpush1.msra.mxu0 0.0
    %456 = vmatprep.subr.mxu0 0.0
    %457 = vmatpush1.msra.mxu0 0.0
    %458 = vmatprep.subr.mxu0 0.0
    %459 = vmatpush1.msra.mxu0 0.0
    %460 = vmatprep.subr.mxu0 0.0
    %461 = vmatpush1.msra.mxu0 0.0
    %462 = vmatprep.subr.mxu0 0.0
    %463 = vmatpush1.msra.mxu0 0.0
    %464 = vmatprep.subr.mxu0 0.0
    %465 = vmatpush1.msra.mxu0 0.0
    %466 = vmatprep.subr.mxu0 0.0
    %467 = vmatpush1.msra.mxu0 0.0
    %468 = vmatprep.subr.mxu0 0.0
    %469 = vmatpush1.msra.mxu0 %v134
    %470 = vmatprep.subr.mxu0 0.0
    %471 = vmatpush1.msra.mxu0 %v133
    %472 = vmatprep.subr.mxu0 0.0
    %473 = vmatpush2.msra.mxu0 0.0
    %474 = vmatprep.subr.mxu0 0.0
    %475 = vmatpush2.msra.mxu0 0.0
    %476 = vmatprep.subr.mxu0 0.0
    %477 = vmatpush2.msra.mxu0 0.0
    %478 = vmatprep.subr.mxu0 0.0
    %479 = vmatpush2.msra.mxu0 0.0
    %480 = vmatprep.subr.mxu0 0.0
    %481 = vmatpush2.msra.mxu0 0.0
    %482 = vmatprep.subr.mxu0 0.0
    %483 = vmatpush2.msra.mxu0 0.0
    %484 = vmatprep.subr.mxu0 0.0
    %485 = vmatpush2.msra.mxu0 0.0
    %486 = vmatprep.subr.mxu0 0.0
    %487 = vmatpush2.msra.mxu0 0.0
    %488 = vmatprep.subr.mxu0 0.0
    %489 = vmatpush2.msra.mxu0 0.0
    %490 = vmatprep.subr.mxu0 0.0
    %491 = vmatpush2.msra.mxu0 0.0
    %492 = vmatprep.subr.mxu0 0.0
    %493 = vmatpush2.msra.mxu0 0.0
    %494 = vmatprep.subr.mxu0 0.0
    %495 = vmatpush2.msra.mxu0 0.0
    %496 = vmatprep.subr.mxu0 0.0
    %497 = vmatpush2.msra.mxu0 0.0
    %498 = vmatprep.subr.mxu0 0.0
    %499 = vmatpush2.msra.mxu0 0.0
    %500 = vmatprep.subr.mxu0 0.0
    %501 = vmatpush2.msra.mxu0 0.0
    %502 = vmatprep.subr.mxu0 0.0
    %503 = vmatpush2.msra.mxu0 0.0
    %504 = vmatprep.mubr.f32.mxu0 0.0
    %505 = vmatmul.mubr.f32.gmra.mxu0 %v228
    %v506 = vpop.f32.mrf.mxu0
    %v507 = vadd.f32 %v437, %v506
    %v508 = vpop.f32.mrf.mxu0
    %509 = vdwg.mxu0
    %510 = vst [vmem:[#allocation5] sm:$0xff] %v507
    // Predicated region
    $region18: #{_lambda_.1} parent=1 // pred_check
      _
    $region19: #{_lambda_.1} parent=1 // pred_check_branch
      %512 = sbr.rel (0) target = $region21
    $region20: #{_lambda_.1} parent=1 // pred_region
      %s514 = ssub.s32 128, 32
      %515 = vsyncadd [#allocation4], %s514
      %s516 = sshll.u32 [#allocation5], 4
      %s517 = int_to_ptr.vmem [resolvable:$true] %s516
      %522 = dma.vmem_to_hbm [thread:$0]  %s517, 32, %s3, [#allocation4], 32, 32, 2
    $region21: #{_lambda_.1} parent=1 // pred_fallthru
      _
    // Predicated region
    $region22: #{_lambda_.1} parent=1 // pred_check
      _
    $region23: #{_lambda_.1} parent=1 // pred_check_branch
      %524 = sbr.rel (0) target = $region25
    $region24: #{_lambda_.1} parent=1 // pred_region
      %525 = dma.done [#allocation4], 128
    $region25: #{_lambda_.1} parent=1 // pred_fallthru
      _
    %526 = vsyncpa [#allocation3], 1
    %527 = vsyncpa [#allocation4], 1

</llo_original>
